<compile_context>
chip_gen: v7x
topology: tpu7x:2x2x1
jax: 0.10.0
libtpu: 0.0.40
codegen_flags: <defaults>
</compile_context>

<pallas_src>
import jax
import jax.numpy as jnp
from jax.experimental import pallas as pl
from jax.experimental.pallas import tpu as pltpu

_LANE = 128
_SUB = 8


def _round_up(a, b):
    return -(-a // b) * b


def _vmem_budget_and_limit():
    """(input block budget bytes, vmem_limit_bytes), gated on TPU generation."""
    try:
        kind = jax.devices()[0].device_kind.lower()
    except Exception:  # pragma: no cover - defensive
        kind = ""
    if "v5" in kind or "v6" in kind:
        # 128 MiB physical VMEM: larger tiles amortize per-step overhead.
        return 48 * 1024 * 1024, 96 * 1024 * 1024
    # Conservative default (v7x has 64 MiB per TensorCore).
    return 16 * 1024 * 1024, 32 * 1024 * 1024


def _make_kernel(num_heads, n, tile_rows, tiles_per_split, length, covered):
    """Kernel: per grid step reduce `num_heads` logit tiles + one target tile
    into a grid-resident (3K+1, N, 128) per-lane partial accumulator."""
    needs_mask = covered != length

    def kernel(t_ref, *refs):
        logit_refs = refs[:num_heads]
        acc_ref = refs[num_heads]          # (3K+1, N, 128) grid-resident

        @pl.when(pl.program_id(1) == 0)
        def _init():
            acc_ref[...] = jnp.zeros_like(acc_ref)

        # Target-side work is head-independent: load / cast / mask it once.
        t = t_ref[...]
        if t.dtype != jnp.float32:
            t = t.astype(jnp.float32)

        if needs_mask:
            blk = pl.program_id(0) * tiles_per_split + pl.program_id(1)
            base = blk * (tile_rows * _LANE)
            rows = jax.lax.broadcasted_iota(jnp.int32, (tile_rows, _LANE), 0)
            lanes = jax.lax.broadcasted_iota(jnp.int32, (tile_rows, _LANE), 1)
            valid = (base + rows * _LANE + lanes) < length     # (tile_rows,128)
            valid = valid[None]                                # (1,tile_rows,128)
            t = jnp.where(valid, t, 0.0)

        bce_parts, inter_parts, psum_parts = [], [], []
        for x_ref in logit_refs:
            x = x_ref[...]
            if x.dtype != jnp.float32:
                x = x.astype(jnp.float32)
            ax = jnp.abs(x)
            e = jnp.exp(-ax)                                   # EUP
            sp = jnp.log(1.0 + e)                              # EUP (log1p(e))
            # Stable BCE-with-logits form (== -t*log(p) - (1-t)*log(1-p)).
            bce_el = jnp.maximum(x, 0.0) - x * t + sp          # VPU
            denom = 1.0 + e
            r = pl.reciprocal(denom, approx=True)              # EUP (cheap)
            r = r * (2.0 - denom * r)                          # 1 Newton step (VPU)
            p = jnp.where(x >= 0.0, r, e * r)                  # sigmoid(x)
            if needs_mask:
                bce_el = jnp.where(valid, bce_el, 0.0)
                p = jnp.where(valid, p, 0.0)
            # Row-first reduce -> (N, 128) per-lane partials (VPU adds).
            bce_parts.append(jnp.sum(bce_el, axis=1))
            inter_parts.append(jnp.sum(p * t, axis=1))
            psum_parts.append(jnp.sum(p, axis=1))
        t_part = jnp.sum(t, axis=1)                            # (N, 128)

        update = jnp.stack(bce_parts + inter_parts + psum_parts + [t_part],
                           axis=0)                             # (3K+1, N, 128)
        acc_ref[...] += update                                 # single full-block +=

    return kernel


def _bcedice_reductions(logits_list, target2d):
    """logits_list: K arrays (N, L) of raw logits; target2d: (N, L).

    Returns a (3K+1, N) f32 array with rows:
      [bce_sum per head | intersection_sum per head | p_sum per head | t_sum].
    """
    num_heads = len(logits_list)
    n, length = target2d.shape
    budget, vmem_limit = _vmem_budget_and_limit()

    rows = pl.cdiv(length, _LANE)
    rows_arr = max(rows, _SUB)                 # at least one full 8-row group
    length_arr = rows_arr * _LANE

    itemsize = max(a.dtype.itemsize for a in list(logits_list) + [target2d])
    # Bytes for one 8-row group across all (K+1) inputs, double-buffered.
    bytes_per_group = (num_heads + 1) * 2 * n * _SUB * _LANE * itemsize
    max_rows = max(1, budget // bytes_per_group) * _SUB

    # Leading "parallel" axis: lets v7x use both TensorCores; harmless elsewhere.
    num_splits = 2 if rows_arr >= 2 * _SUB else 1
    rows_per_split = _round_up(pl.cdiv(rows_arr, num_splits), _SUB)
    tile_rows = min(rows_per_split, max_rows)
    tiles_per_split = pl.cdiv(rows_per_split, tile_rows)
    covered = num_splits * tiles_per_split * tile_rows * _LANE

    def prep(x2d):
        # Only the sub-128 ragged tail is padded (no-op when L % 128 == 0);
        # tile-boundary raggedness is masked inside the kernel instead of a
        # full padded copy of the volume.
        if length_arr != length:
            x2d = jnp.pad(x2d, ((0, 0), (0, length_arr - length)))
        return x2d.reshape(n, rows_arr, _LANE)

    tgt = prep(target2d)
    logits = [prep(x) for x in logits_list]

    nrows_out = 3 * num_heads + 1
    max_blk = pl.cdiv(rows_arr, tile_rows) - 1
    blk = (n, tile_rows, _LANE)

    def imap(s, l):
        # Clamp fully out-of-range blocks to the last real block; the in-kernel
        # mask (computed from the unclamped block id) zeroes their contribution.
        return (0, jnp.minimum(s * tiles_per_split + l, max_blk), 0)

    out = pl.pallas_call(
        _make_kernel(num_heads, n, tile_rows, tiles_per_split, length, covered),
        out_shape=jax.ShapeDtypeStruct((num_splits * nrows_out, n, _LANE),
                                       jnp.float32),
        grid_spec=pltpu.PrefetchScalarGridSpec(
            num_scalar_prefetch=0,
            grid=(num_splits, tiles_per_split),
            in_specs=[pl.BlockSpec(blk, imap)] * (num_heads + 1),
            out_specs=pl.BlockSpec((nrows_out, n, _LANE),
                                   lambda s, l: (s, 0, 0)),
        ),
        compiler_params=pltpu.CompilerParams(
            dimension_semantics=("parallel", "arbitrary"),
            vmem_limit_bytes=vmem_limit,
        ),
    )(tgt, *logits)

    # Cross-lane + cross-split reduction on a tiny array, done by XLA.
    red = out.reshape(num_splits, nrows_out, n, _LANE)
    return jnp.sum(red, axis=(0, 3))           # (3K+1, N)


def gt_bce_dice_loss(pre, out, target):
    """pre: (gt_pre4, gt_pre3, gt_pre2, gt_pre1, gt_pre0) logits; out: logits;
    target: same shape, values in [0, 1]."""
    n = out.shape[0]
    tgt2d = target.reshape(n, -1)
    length = tgt2d.shape[1]

    heads = [out.reshape(n, -1)] + [p.reshape(n, -1) for p in pre]
    k = len(heads)
    red = _bcedice_reductions(heads, tgt2d)                   # (3K+1, N)
    bce_s = red[0:k].T                                        # (N, K)
    inter_s = red[k:2 * k].T                                  # (N, K)
    p_s = red[2 * k:3 * k].T                                  # (N, K)
    t_s = red[3 * k][:, None]                                 # (N, 1)

    smooth = 1e-05
    bce = jnp.sum(bce_s, axis=0) / (n * length)                             # (K,)
    dice = (2.0 * inter_s ** 2 + smooth) / (p_s ** 2 + t_s ** 2 + smooth)   # (N, K)
    dice_loss = 1.0 - jnp.sum(dice, axis=0) / n                             # (K,)
    weights = jnp.array([1.0, 0.1, 0.2, 0.3, 0.4, 0.5], dtype=jnp.float32)
    return jnp.sum((bce + dice_loss) * weights)


if __name__ == "__main__":
    key = jax.random.PRNGKey(0)
    k_out, k_tgt, *k_pre = jax.random.split(key, 7)

    N, C, H, W = 2, 4, 16, 16
    out = jax.random.normal(k_out, (N, C, H, W), dtype=jnp.float32)
    pre = tuple(
        jax.random.normal(k, (N, C, H, W), dtype=jnp.float32) for k in k_pre
    )
    # Binary segmentation target in {0, 1}
    target = jax.random.bernoulli(k_tgt, 0.5, (N, C, H, W)).astype(jnp.float32)

    loss_fn = jax.jit(gt_bce_dice_loss)
    loss = loss_fn(pre, out, target)
    jax.block_until_ready(loss)

    # Pure-JAX reference (mirrors the PyTorch module) for a sanity check.
    def _ref_bcedice(x, t):
        b = x.shape[0]
        p = jax.nn.sigmoid(x.reshape(b, -1).astype(jnp.float32))
        tt = t.reshape(b, -1).astype(jnp.float32)
        bce_el = -(tt * jnp.maximum(jnp.log(p), -100.0)
                   + (1.0 - tt) * jnp.maximum(jnp.log(1.0 - p), -100.0))
        bce = jnp.mean(bce_el)
        inter = jnp.sum(p * tt, axis=1)
        sm = 1e-05
        dice = (2.0 * inter ** 2 + sm) / (
            jnp.sum(p, axis=1) ** 2 + jnp.sum(tt, axis=1) ** 2 + sm)
        return bce + (1.0 - jnp.sum(dice) / b)

    ref = (_ref_bcedice(out, target)
           + 0.1 * _ref_bcedice(pre[0], target)
           + 0.2 * _ref_bcedice(pre[1], target)
           + 0.3 * _ref_bcedice(pre[2], target)
           + 0.4 * _ref_bcedice(pre[3], target)
           + 0.5 * _ref_bcedice(pre[4], target))

    assert loss.shape == () and bool(jnp.isfinite(loss))
    assert abs(float(loss) - float(ref)) <= 1e-4 * max(1.0, abs(float(ref)))
    print("KERNEL_OK")
</pallas_src>

<mosaic_0001>
module attributes {stable_mosaic.version = 11 : i64} {
  func.func @kernel(%arg0: i32, %arg1: i32, %arg2: memref<2x8x128xf32, #tpu.memory_space<vmem>>, %arg3: memref<2x8x128xf32, #tpu.memory_space<vmem>>, %arg4: memref<2x8x128xf32, #tpu.memory_space<vmem>>, %arg5: memref<2x8x128xf32, #tpu.memory_space<vmem>>, %arg6: memref<2x8x128xf32, #tpu.memory_space<vmem>>, %arg7: memref<2x8x128xf32, #tpu.memory_space<vmem>>, %arg8: memref<2x8x128xf32, #tpu.memory_space<vmem>>, %arg9: memref<19x2x128xf32, #tpu.memory_space<vmem>>) attributes {dimension_semantics = [#tpu.dimension_semantics<parallel>, #tpu.dimension_semantics<arbitrary>], iteration_bounds = array<i64: 1, 1>, scalar_prefetch = 0 : i64, scratch_operands = 0 : i64, tpu.core_type = #tpu.core_type<tc>, window_params = [{transform_indices = @transform_0, window_bounds = array<i64: 2, 8, 128>}, {transform_indices = @transform_1, window_bounds = array<i64: 2, 8, 128>}, {transform_indices = @transform_2, window_bounds = array<i64: 2, 8, 128>}, {transform_indices = @transform_3, window_bounds = array<i64: 2, 8, 128>}, {transform_indices = @transform_4, window_bounds = array<i64: 2, 8, 128>}, {transform_indices = @transform_5, window_bounds = array<i64: 2, 8, 128>}, {transform_indices = @transform_6, window_bounds = array<i64: 2, 8, 128>}, {transform_indices = @transform_7, window_bounds = array<i64: 19, 2, 128>}]} {
    %c0_i32 = arith.constant 0 : i32
    %0 = arith.cmpi eq, %arg1, %c0_i32 : i32
    %1 = arith.extui %0 : i1 to i32
    %c0_i32_0 = arith.constant 0 : i32
    %2 = arith.cmpi ne, %1, %c0_i32_0 : i32
    scf.if %2 {
      %cst_81 = arith.constant 0.000000e+00 : f32
      %198 = vector.broadcast %cst_81 : f32 to vector<19x2x128xf32>
      %c0_82 = arith.constant 0 : index
      %c0_83 = arith.constant 0 : index
      %c0_84 = arith.constant 0 : index
      %199 = vector.load %arg9[%c0_82, %c0_83, %c0_84] : memref<19x2x128xf32, #tpu.memory_space<vmem>>, vector<19x2x128xf32>
      tpu.vector_store %arg9[%c0_82, %c0_83, %c0_84], %198 {strides = array<i32>} : memref<19x2x128xf32, #tpu.memory_space<vmem>>, vector<19x2x128xf32>,
    } else {
    }
    %c0 = arith.constant 0 : index
    %c0_1 = arith.constant 0 : index
    %c0_2 = arith.constant 0 : index
    %3 = vector.load %arg2[%c0, %c0_1, %c0_2] : memref<2x8x128xf32, #tpu.memory_space<vmem>>, vector<2x8x128xf32>
    %c0_3 = arith.constant 0 : index
    %c0_4 = arith.constant 0 : index
    %c0_5 = arith.constant 0 : index
    %4 = vector.load %arg3[%c0_3, %c0_4, %c0_5] : memref<2x8x128xf32, #tpu.memory_space<vmem>>, vector<2x8x128xf32>
    %5 = math.absf %4 : vector<2x8x128xf32>
    %cst = arith.constant 0.000000e+00 : f32
    %6 = vector.broadcast %cst : f32 to vector<2x8x128xf32>
    %7 = arith.subf %6, %5 : vector<2x8x128xf32>
    %8 = math.exp %7 : vector<2x8x128xf32>
    %cst_6 = arith.constant 1.000000e+00 : f32
    %9 = vector.broadcast %cst_6 : f32 to vector<2x8x128xf32>
    %10 = arith.addf %9, %8 : vector<2x8x128xf32>
    %11 = math.log %10 : vector<2x8x128xf32>
    %cst_7 = arith.constant 0.000000e+00 : f32
    %12 = vector.broadcast %cst_7 : f32 to vector<2x8x128xf32>
    %13 = arith.maximumf %4, %12 : vector<2x8x128xf32>
    %14 = arith.mulf %4, %3 : vector<2x8x128xf32>
    %15 = arith.subf %13, %14 : vector<2x8x128xf32>
    %16 = arith.addf %15, %11 : vector<2x8x128xf32>
    %cst_8 = arith.constant 1.000000e+00 : f32
    %17 = vector.broadcast %cst_8 : f32 to vector<2x8x128xf32>
    %18 = arith.addf %17, %8 : vector<2x8x128xf32>
    %19 = tpu.reciprocal %18 {approx = true} : vector<2x8x128xf32> -> vector<2x8x128xf32>
    %20 = arith.mulf %18, %19 : vector<2x8x128xf32>
    %cst_9 = arith.constant 2.000000e+00 : f32
    %21 = vector.broadcast %cst_9 : f32 to vector<2x8x128xf32>
    %22 = arith.subf %21, %20 : vector<2x8x128xf32>
    %23 = arith.mulf %19, %22 : vector<2x8x128xf32>
    %cst_10 = arith.constant 0.000000e+00 : f32
    %24 = vector.broadcast %cst_10 : f32 to vector<2x8x128xf32>
    %25 = arith.cmpf oge, %4, %24 : vector<2x8x128xf32>
    %26 = arith.mulf %8, %23 : vector<2x8x128xf32>
    %27 = arith.select %25, %23, %26 : vector<2x8x128xi1>, vector<2x8x128xf32>
    %cst_11 = arith.constant dense<0.000000e+00> : vector<2x128xf32>
    %28 = vector.multi_reduction <add>, %16, %cst_11 [1] : vector<2x8x128xf32> to vector<2x128xf32>
    %29 = arith.mulf %27, %3 : vector<2x8x128xf32>
    %cst_12 = arith.constant dense<0.000000e+00> : vector<2x128xf32>
    %30 = vector.multi_reduction <add>, %29, %cst_12 [1] : vector<2x8x128xf32> to vector<2x128xf32>
    %cst_13 = arith.constant dense<0.000000e+00> : vector<2x128xf32>
    %31 = vector.multi_reduction <add>, %27, %cst_13 [1] : vector<2x8x128xf32> to vector<2x128xf32>
    %c0_14 = arith.constant 0 : index
    %c0_15 = arith.constant 0 : index
    %c0_16 = arith.constant 0 : index
    %32 = vector.load %arg4[%c0_14, %c0_15, %c0_16] : memref<2x8x128xf32, #tpu.memory_space<vmem>>, vector<2x8x128xf32>
    %33 = math.absf %32 : vector<2x8x128xf32>
    %cst_17 = arith.constant 0.000000e+00 : f32
    %34 = vector.broadcast %cst_17 : f32 to vector<2x8x128xf32>
    %35 = arith.subf %34, %33 : vector<2x8x128xf32>
    %36 = math.exp %35 : vector<2x8x128xf32>
    %cst_18 = arith.constant 1.000000e+00 : f32
    %37 = vector.broadcast %cst_18 : f32 to vector<2x8x128xf32>
    %38 = arith.addf %37, %36 : vector<2x8x128xf32>
    %39 = math.log %38 : vector<2x8x128xf32>
    %cst_19 = arith.constant 0.000000e+00 : f32
    %40 = vector.broadcast %cst_19 : f32 to vector<2x8x128xf32>
    %41 = arith.maximumf %32, %40 : vector<2x8x128xf32>
    %42 = arith.mulf %32, %3 : vector<2x8x128xf32>
    %43 = arith.subf %41, %42 : vector<2x8x128xf32>
    %44 = arith.addf %43, %39 : vector<2x8x128xf32>
    %cst_20 = arith.constant 1.000000e+00 : f32
    %45 = vector.broadcast %cst_20 : f32 to vector<2x8x128xf32>
    %46 = arith.addf %45, %36 : vector<2x8x128xf32>
    %47 = tpu.reciprocal %46 {approx = true} : vector<2x8x128xf32> -> vector<2x8x128xf32>
    %48 = arith.mulf %46, %47 : vector<2x8x128xf32>
    %cst_21 = arith.constant 2.000000e+00 : f32
    %49 = vector.broadcast %cst_21 : f32 to vector<2x8x128xf32>
    %50 = arith.subf %49, %48 : vector<2x8x128xf32>
    %51 = arith.mulf %47, %50 : vector<2x8x128xf32>
    %cst_22 = arith.constant 0.000000e+00 : f32
    %52 = vector.broadcast %cst_22 : f32 to vector<2x8x128xf32>
    %53 = arith.cmpf oge, %32, %52 : vector<2x8x128xf32>
    %54 = arith.mulf %36, %51 : vector<2x8x128xf32>
    %55 = arith.select %53, %51, %54 : vector<2x8x128xi1>, vector<2x8x128xf32>
    %cst_23 = arith.constant dense<0.000000e+00> : vector<2x128xf32>
    %56 = vector.multi_reduction <add>, %44, %cst_23 [1] : vector<2x8x128xf32> to vector<2x128xf32>
    %57 = arith.mulf %55, %3 : vector<2x8x128xf32>
    %cst_24 = arith.constant dense<0.000000e+00> : vector<2x128xf32>
    %58 = vector.multi_reduction <add>, %57, %cst_24 [1] : vector<2x8x128xf32> to vector<2x128xf32>
    %cst_25 = arith.constant dense<0.000000e+00> : vector<2x128xf32>
    %59 = vector.multi_reduction <add>, %55, %cst_25 [1] : vector<2x8x128xf32> to vector<2x128xf32>
    %c0_26 = arith.constant 0 : index
    %c0_27 = arith.constant 0 : index
    %c0_28 = arith.constant 0 : index
    %60 = vector.load %arg5[%c0_26, %c0_27, %c0_28] : memref<2x8x128xf32, #tpu.memory_space<vmem>>, vector<2x8x128xf32>
    %61 = math.absf %60 : vector<2x8x128xf32>
    %cst_29 = arith.constant 0.000000e+00 : f32
    %62 = vector.broadcast %cst_29 : f32 to vector<2x8x128xf32>
    %63 = arith.subf %62, %61 : vector<2x8x128xf32>
    %64 = math.exp %63 : vector<2x8x128xf32>
    %cst_30 = arith.constant 1.000000e+00 : f32
    %65 = vector.broadcast %cst_30 : f32 to vector<2x8x128xf32>
    %66 = arith.addf %65, %64 : vector<2x8x128xf32>
    %67 = math.log %66 : vector<2x8x128xf32>
    %cst_31 = arith.constant 0.000000e+00 : f32
    %68 = vector.broadcast %cst_31 : f32 to vector<2x8x128xf32>
    %69 = arith.maximumf %60, %68 : vector<2x8x128xf32>
    %70 = arith.mulf %60, %3 : vector<2x8x128xf32>
    %71 = arith.subf %69, %70 : vector<2x8x128xf32>
    %72 = arith.addf %71, %67 : vector<2x8x128xf32>
    %cst_32 = arith.constant 1.000000e+00 : f32
    %73 = vector.broadcast %cst_32 : f32 to vector<2x8x128xf32>
    %74 = arith.addf %73, %64 : vector<2x8x128xf32>
    %75 = tpu.reciprocal %74 {approx = true} : vector<2x8x128xf32> -> vector<2x8x128xf32>
    %76 = arith.mulf %74, %75 : vector<2x8x128xf32>
    %cst_33 = arith.constant 2.000000e+00 : f32
    %77 = vector.broadcast %cst_33 : f32 to vector<2x8x128xf32>
    %78 = arith.subf %77, %76 : vector<2x8x128xf32>
    %79 = arith.mulf %75, %78 : vector<2x8x128xf32>
    %cst_34 = arith.constant 0.000000e+00 : f32
    %80 = vector.broadcast %cst_34 : f32 to vector<2x8x128xf32>
    %81 = arith.cmpf oge, %60, %80 : vector<2x8x128xf32>
    %82 = arith.mulf %64, %79 : vector<2x8x128xf32>
    %83 = arith.select %81, %79, %82 : vector<2x8x128xi1>, vector<2x8x128xf32>
    %cst_35 = arith.constant dense<0.000000e+00> : vector<2x128xf32>
    %84 = vector.multi_reduction <add>, %72, %cst_35 [1] : vector<2x8x128xf32> to vector<2x128xf32>
    %85 = arith.mulf %83, %3 : vector<2x8x128xf32>
    %cst_36 = arith.constant dense<0.000000e+00> : vector<2x128xf32>
    %86 = vector.multi_reduction <add>, %85, %cst_36 [1] : vector<2x8x128xf32> to vector<2x128xf32>
    %cst_37 = arith.constant dense<0.000000e+00> : vector<2x128xf32>
    %87 = vector.multi_reduction <add>, %83, %cst_37 [1] : vector<2x8x128xf32> to vector<2x128xf32>
    %c0_38 = arith.constant 0 : index
    %c0_39 = arith.constant 0 : index
    %c0_40 = arith.constant 0 : index
    %88 = vector.load %arg6[%c0_38, %c0_39, %c0_40] : memref<2x8x128xf32, #tpu.memory_space<vmem>>, vector<2x8x128xf32>
    %89 = math.absf %88 : vector<2x8x128xf32>
    %cst_41 = arith.constant 0.000000e+00 : f32
    %90 = vector.broadcast %cst_41 : f32 to vector<2x8x128xf32>
    %91 = arith.subf %90, %89 : vector<2x8x128xf32>
    %92 = math.exp %91 : vector<2x8x128xf32>
    %cst_42 = arith.constant 1.000000e+00 : f32
    %93 = vector.broadcast %cst_42 : f32 to vector<2x8x128xf32>
    %94 = arith.addf %93, %92 : vector<2x8x128xf32>
    %95 = math.log %94 : vector<2x8x128xf32>
    %cst_43 = arith.constant 0.000000e+00 : f32
    %96 = vector.broadcast %cst_43 : f32 to vector<2x8x128xf32>
    %97 = arith.maximumf %88, %96 : vector<2x8x128xf32>
    %98 = arith.mulf %88, %3 : vector<2x8x128xf32>
    %99 = arith.subf %97, %98 : vector<2x8x128xf32>
    %100 = arith.addf %99, %95 : vector<2x8x128xf32>
    %cst_44 = arith.constant 1.000000e+00 : f32
    %101 = vector.broadcast %cst_44 : f32 to vector<2x8x128xf32>
    %102 = arith.addf %101, %92 : vector<2x8x128xf32>
    %103 = tpu.reciprocal %102 {approx = true} : vector<2x8x128xf32> -> vector<2x8x128xf32>
    %104 = arith.mulf %102, %103 : vector<2x8x128xf32>
    %cst_45 = arith.constant 2.000000e+00 : f32
    %105 = vector.broadcast %cst_45 : f32 to vector<2x8x128xf32>
    %106 = arith.subf %105, %104 : vector<2x8x128xf32>
    %107 = arith.mulf %103, %106 : vector<2x8x128xf32>
    %cst_46 = arith.constant 0.000000e+00 : f32
    %108 = vector.broadcast %cst_46 : f32 to vector<2x8x128xf32>
    %109 = arith.cmpf oge, %88, %108 : vector<2x8x128xf32>
    %110 = arith.mulf %92, %107 : vector<2x8x128xf32>
    %111 = arith.select %109, %107, %110 : vector<2x8x128xi1>, vector<2x8x128xf32>
    %cst_47 = arith.constant dense<0.000000e+00> : vector<2x128xf32>
    %112 = vector.multi_reduction <add>, %100, %cst_47 [1] : vector<2x8x128xf32> to vector<2x128xf32>
    %113 = arith.mulf %111, %3 : vector<2x8x128xf32>
    %cst_48 = arith.constant dense<0.000000e+00> : vector<2x128xf32>
    %114 = vector.multi_reduction <add>, %113, %cst_48 [1] : vector<2x8x128xf32> to vector<2x128xf32>
    %cst_49 = arith.constant dense<0.000000e+00> : vector<2x128xf32>
    %115 = vector.multi_reduction <add>, %111, %cst_49 [1] : vector<2x8x128xf32> to vector<2x128xf32>
    %c0_50 = arith.constant 0 : index
    %c0_51 = arith.constant 0 : index
    %c0_52 = arith.constant 0 : index
    %116 = vector.load %arg7[%c0_50, %c0_51, %c0_52] : memref<2x8x128xf32, #tpu.memory_space<vmem>>, vector<2x8x128xf32>
    %117 = math.absf %116 : vector<2x8x128xf32>
    %cst_53 = arith.constant 0.000000e+00 : f32
    %118 = vector.broadcast %cst_53 : f32 to vector<2x8x128xf32>
    %119 = arith.subf %118, %117 : vector<2x8x128xf32>
    %120 = math.exp %119 : vector<2x8x128xf32>
    %cst_54 = arith.constant 1.000000e+00 : f32
    %121 = vector.broadcast %cst_54 : f32 to vector<2x8x128xf32>
    %122 = arith.addf %121, %120 : vector<2x8x128xf32>
    %123 = math.log %122 : vector<2x8x128xf32>
    %cst_55 = arith.constant 0.000000e+00 : f32
    %124 = vector.broadcast %cst_55 : f32 to vector<2x8x128xf32>
    %125 = arith.maximumf %116, %124 : vector<2x8x128xf32>
    %126 = arith.mulf %116, %3 : vector<2x8x128xf32>
    %127 = arith.subf %125, %126 : vector<2x8x128xf32>
    %128 = arith.addf %127, %123 : vector<2x8x128xf32>
    %cst_56 = arith.constant 1.000000e+00 : f32
    %129 = vector.broadcast %cst_56 : f32 to vector<2x8x128xf32>
    %130 = arith.addf %129, %120 : vector<2x8x128xf32>
    %131 = tpu.reciprocal %130 {approx = true} : vector<2x8x128xf32> -> vector<2x8x128xf32>
    %132 = arith.mulf %130, %131 : vector<2x8x128xf32>
    %cst_57 = arith.constant 2.000000e+00 : f32
    %133 = vector.broadcast %cst_57 : f32 to vector<2x8x128xf32>
    %134 = arith.subf %133, %132 : vector<2x8x128xf32>
    %135 = arith.mulf %131, %134 : vector<2x8x128xf32>
    %cst_58 = arith.constant 0.000000e+00 : f32
    %136 = vector.broadcast %cst_58 : f32 to vector<2x8x128xf32>
    %137 = arith.cmpf oge, %116, %136 : vector<2x8x128xf32>
    %138 = arith.mulf %120, %135 : vector<2x8x128xf32>
    %139 = arith.select %137, %135, %138 : vector<2x8x128xi1>, vector<2x8x128xf32>
    %cst_59 = arith.constant dense<0.000000e+00> : vector<2x128xf32>
    %140 = vector.multi_reduction <add>, %128, %cst_59 [1] : vector<2x8x128xf32> to vector<2x128xf32>
    %141 = arith.mulf %139, %3 : vector<2x8x128xf32>
    %cst_60 = arith.constant dense<0.000000e+00> : vector<2x128xf32>
    %142 = vector.multi_reduction <add>, %141, %cst_60 [1] : vector<2x8x128xf32> to vector<2x128xf32>
    %cst_61 = arith.constant dense<0.000000e+00> : vector<2x128xf32>
    %143 = vector.multi_reduction <add>, %139, %cst_61 [1] : vector<2x8x128xf32> to vector<2x128xf32>
    %c0_62 = arith.constant 0 : index
    %c0_63 = arith.constant 0 : index
    %c0_64 = arith.constant 0 : index
    %144 = vector.load %arg8[%c0_62, %c0_63, %c0_64] : memref<2x8x128xf32, #tpu.memory_space<vmem>>, vector<2x8x128xf32>
    %145 = math.absf %144 : vector<2x8x128xf32>
    %cst_65 = arith.constant 0.000000e+00 : f32
    %146 = vector.broadcast %cst_65 : f32 to vector<2x8x128xf32>
    %147 = arith.subf %146, %145 : vector<2x8x128xf32>
    %148 = math.exp %147 : vector<2x8x128xf32>
    %cst_66 = arith.constant 1.000000e+00 : f32
    %149 = vector.broadcast %cst_66 : f32 to vector<2x8x128xf32>
    %150 = arith.addf %149, %148 : vector<2x8x128xf32>
    %151 = math.log %150 : vector<2x8x128xf32>
    %cst_67 = arith.constant 0.000000e+00 : f32
    %152 = vector.broadcast %cst_67 : f32 to vector<2x8x128xf32>
    %153 = arith.maximumf %144, %152 : vector<2x8x128xf32>
    %154 = arith.mulf %144, %3 : vector<2x8x128xf32>
    %155 = arith.subf %153, %154 : vector<2x8x128xf32>
    %156 = arith.addf %155, %151 : vector<2x8x128xf32>
    %cst_68 = arith.constant 1.000000e+00 : f32
    %157 = vector.broadcast %cst_68 : f32 to vector<2x8x128xf32>
    %158 = arith.addf %157, %148 : vector<2x8x128xf32>
    %159 = tpu.reciprocal %158 {approx = true} : vector<2x8x128xf32> -> vector<2x8x128xf32>
    %160 = arith.mulf %158, %159 : vector<2x8x128xf32>
    %cst_69 = arith.constant 2.000000e+00 : f32
    %161 = vector.broadcast %cst_69 : f32 to vector<2x8x128xf32>
    %162 = arith.subf %161, %160 : vector<2x8x128xf32>
    %163 = arith.mulf %159, %162 : vector<2x8x128xf32>
    %cst_70 = arith.constant 0.000000e+00 : f32
    %164 = vector.broadcast %cst_70 : f32 to vector<2x8x128xf32>
    %165 = arith.cmpf oge, %144, %164 : vector<2x8x128xf32>
    %166 = arith.mulf %148, %163 : vector<2x8x128xf32>
    %167 = arith.select %165, %163, %166 : vector<2x8x128xi1>, vector<2x8x128xf32>
    %cst_71 = arith.constant dense<0.000000e+00> : vector<2x128xf32>
    %168 = vector.multi_reduction <add>, %156, %cst_71 [1] : vector<2x8x128xf32> to vector<2x128xf32>
    %169 = arith.mulf %167, %3 : vector<2x8x128xf32>
    %cst_72 = arith.constant dense<0.000000e+00> : vector<2x128xf32>
    %170 = vector.multi_reduction <add>, %169, %cst_72 [1] : vector<2x8x128xf32> to vector<2x128xf32>
    %cst_73 = arith.constant dense<0.000000e+00> : vector<2x128xf32>
    %171 = vector.multi_reduction <add>, %167, %cst_73 [1] : vector<2x8x128xf32> to vector<2x128xf32>
    %cst_74 = arith.constant dense<0.000000e+00> : vector<2x128xf32>
    %172 = vector.multi_reduction <add>, %3, %cst_74 [1] : vector<2x8x128xf32> to vector<2x128xf32>
    %173 = vector.shape_cast %28 : vector<2x128xf32> to vector<1x2x128xf32>
    %174 = vector.shape_cast %56 : vector<2x128xf32> to vector<1x2x128xf32>
    %175 = vector.shape_cast %84 : vector<2x128xf32> to vector<1x2x128xf32>
    %176 = vector.shape_cast %112 : vector<2x128xf32> to vector<1x2x128xf32>
    %177 = vector.shape_cast %140 : vector<2x128xf32> to vector<1x2x128xf32>
    %178 = vector.shape_cast %168 : vector<2x128xf32> to vector<1x2x128xf32>
    %179 = vector.shape_cast %30 : vector<2x128xf32> to vector<1x2x128xf32>
    %180 = vector.shape_cast %58 : vector<2x128xf32> to vector<1x2x128xf32>
    %181 = vector.shape_cast %86 : vector<2x128xf32> to vector<1x2x128xf32>
    %182 = vector.shape_cast %114 : vector<2x128xf32> to vector<1x2x128xf32>
    %183 = vector.shape_cast %142 : vector<2x128xf32> to vector<1x2x128xf32>
    %184 = vector.shape_cast %170 : vector<2x128xf32> to vector<1x2x128xf32>
    %185 = vector.shape_cast %31 : vector<2x128xf32> to vector<1x2x128xf32>
    %186 = vector.shape_cast %59 : vector<2x128xf32> to vector<1x2x128xf32>
    %187 = vector.shape_cast %87 : vector<2x128xf32> to vector<1x2x128xf32>
    %188 = vector.shape_cast %115 : vector<2x128xf32> to vector<1x2x128xf32>
    %189 = vector.shape_cast %143 : vector<2x128xf32> to vector<1x2x128xf32>
    %190 = vector.shape_cast %171 : vector<2x128xf32> to vector<1x2x128xf32>
    %191 = vector.shape_cast %172 : vector<2x128xf32> to vector<1x2x128xf32>
    %192 = tpu.concatenate %173, %174, %175, %176, %177, %178, %179, %180, %181, %182, %183, %184, %185, %186, %187, %188 in 0 : vector<1x2x128xf32>, vector<1x2x128xf32>, vector<1x2x128xf32>, vector<1x2x128xf32>, vector<1x2x128xf32>, vector<1x2x128xf32>, vector<1x2x128xf32>, vector<1x2x128xf32>, vector<1x2x128xf32>, vector<1x2x128xf32>, vector<1x2x128xf32>, vector<1x2x128xf32>, vector<1x2x128xf32>, vector<1x2x128xf32>, vector<1x2x128xf32>, vector<1x2x128xf32> -> vector<16x2x128xf32>
    %193 = tpu.concatenate %189, %190, %191 in 0 : vector<1x2x128xf32>, vector<1x2x128xf32>, vector<1x2x128xf32> -> vector<3x2x128xf32>
    %194 = tpu.concatenate %192, %193 in 0 : vector<16x2x128xf32>, vector<3x2x128xf32> -> vector<19x2x128xf32>
    %c0_75 = arith.constant 0 : index
    %c0_76 = arith.constant 0 : index
    %c0_77 = arith.constant 0 : index
    %195 = vector.load %arg9[%c0_75, %c0_76, %c0_77] : memref<19x2x128xf32, #tpu.memory_space<vmem>>, vector<19x2x128xf32>
    %196 = arith.addf %195, %194 : vector<19x2x128xf32>
    %c0_78 = arith.constant 0 : index
    %c0_79 = arith.constant 0 : index
    %c0_80 = arith.constant 0 : index
    %197 = vector.load %arg9[%c0_78, %c0_79, %c0_80] : memref<19x2x128xf32, #tpu.memory_space<vmem>>, vector<19x2x128xf32>
    tpu.vector_store %arg9[%c0_78, %c0_79, %c0_80], %196 {strides = array<i32>} : memref<19x2x128xf32, #tpu.memory_space<vmem>>, vector<19x2x128xf32>,
    return
  }
  func.func @transform_0(%arg0: i32, %arg1: i32) -> (i32, i32, i32) {
    %c1_i32 = arith.constant 1 : i32
    %0 = arith.muli %arg0, %c1_i32 : i32
    %1 = arith.addi %0, %arg1 : i32
    %c0_i32 = arith.constant 0 : i32
    %2 = arith.minsi %1, %c0_i32 : i32
    %c0_i32_0 = arith.constant 0 : i32
    %c0_i32_1 = arith.constant 0 : i32
    %c0_i32_2 = arith.constant 0 : i32
    return %c0_i32_0, %2, %c0_i32_1 : i32, i32, i32
  }
  func.func @transform_1(%arg0: i32, %arg1: i32) -> (i32, i32, i32) {
    %c1_i32 = arith.constant 1 : i32
    %0 = arith.muli %arg0, %c1_i32 : i32
    %1 = arith.addi %0, %arg1 : i32
    %c0_i32 = arith.constant 0 : i32
    %2 = arith.minsi %1, %c0_i32 : i32
    %c0_i32_0 = arith.constant 0 : i32
    %c0_i32_1 = arith.constant 0 : i32
    %c0_i32_2 = arith.constant 0 : i32
    return %c0_i32_0, %2, %c0_i32_1 : i32, i32, i32
  }
  func.func @transform_2(%arg0: i32, %arg1: i32) -> (i32, i32, i32) {
    %c1_i32 = arith.constant 1 : i32
    %0 = arith.muli %arg0, %c1_i32 : i32
    %1 = arith.addi %0, %arg1 : i32
    %c0_i32 = arith.constant 0 : i32
    %2 = arith.minsi %1, %c0_i32 : i32
    %c0_i32_0 = arith.constant 0 : i32
    %c0_i32_1 = arith.constant 0 : i32
    %c0_i32_2 = arith.constant 0 : i32
    return %c0_i32_0, %2, %c0_i32_1 : i32, i32, i32
  }
  func.func @transform_3(%arg0: i32, %arg1: i32) -> (i32, i32, i32) {
    %c1_i32 = arith.constant 1 : i32
    %0 = arith.muli %arg0, %c1_i32 : i32
    %1 = arith.addi %0, %arg1 : i32
    %c0_i32 = arith.constant 0 : i32
    %2 = arith.minsi %1, %c0_i32 : i32
    %c0_i32_0 = arith.constant 0 : i32
    %c0_i32_1 = arith.constant 0 : i32
    %c0_i32_2 = arith.constant 0 : i32
    return %c0_i32_0, %2, %c0_i32_1 : i32, i32, i32
  }
  func.func @transform_4(%arg0: i32, %arg1: i32) -> (i32, i32, i32) {
    %c1_i32 = arith.constant 1 : i32
    %0 = arith.muli %arg0, %c1_i32 : i32
    %1 = arith.addi %0, %arg1 : i32
    %c0_i32 = arith.constant 0 : i32
    %2 = arith.minsi %1, %c0_i32 : i32
    %c0_i32_0 = arith.constant 0 : i32
    %c0_i32_1 = arith.constant 0 : i32
    %c0_i32_2 = arith.constant 0 : i32
    return %c0_i32_0, %2, %c0_i32_1 : i32, i32, i32
  }
  func.func @transform_5(%arg0: i32, %arg1: i32) -> (i32, i32, i32) {
    %c1_i32 = arith.constant 1 : i32
    %0 = arith.muli %arg0, %c1_i32 : i32
    %1 = arith.addi %0, %arg1 : i32
    %c0_i32 = arith.constant 0 : i32
    %2 = arith.minsi %1, %c0_i32 : i32
    %c0_i32_0 = arith.constant 0 : i32
    %c0_i32_1 = arith.constant 0 : i32
    %c0_i32_2 = arith.constant 0 : i32
    return %c0_i32_0, %2, %c0_i32_1 : i32, i32, i32
  }
  func.func @transform_6(%arg0: i32, %arg1: i32) -> (i32, i32, i32) {
    %c1_i32 = arith.constant 1 : i32
    %0 = arith.muli %arg0, %c1_i32 : i32
    %1 = arith.addi %0, %arg1 : i32
    %c0_i32 = arith.constant 0 : i32
    %2 = arith.minsi %1, %c0_i32 : i32
    %c0_i32_0 = arith.constant 0 : i32
    %c0_i32_1 = arith.constant 0 : i32
    %c0_i32_2 = arith.constant 0 : i32
    return %c0_i32_0, %2, %c0_i32_1 : i32, i32, i32
  }
  func.func @transform_7(%arg0: i32, %arg1: i32) -> (i32, i32, i32) {
    %c0_i32 = arith.constant 0 : i32
    %c0_i32_0 = arith.constant 0 : i32
    %c0_i32_1 = arith.constant 0 : i32
    return %arg0, %c0_i32, %c0_i32_0 : i32, i32, i32
  }
}

</mosaic_0001>

<llo_original>
// kernel: gt_bce_dice_loss.1
$region0: #{gt_bce_dice_loss.1}
  #allocation0 [shape = 'u32[]', space=smem, size = 0x4, offset = 0x4, fixed_abs, tag = 'smem constant byte address 0x4 - core index']
  #allocation1 [shape = 'u32[144,128]{1,0:T(1,128)}', space=vmem, size = 0x12000, scoped, tag = 'internal scratch']
  %s0 = inlined_call_operand.vmem [shape: f32[2,8,128], index: 0, kind: input, shape index: {}]
  %s1 = inlined_call_operand.vmem [shape: f32[2,8,128], index: 1, kind: input, shape index: {}]
  %s2 = inlined_call_operand.vmem [shape: f32[2,8,128], index: 2, kind: input, shape index: {}]
  %s3 = inlined_call_operand.vmem [shape: f32[2,8,128], index: 3, kind: input, shape index: {}]
  %s4 = inlined_call_operand.vmem [shape: f32[2,8,128], index: 4, kind: input, shape index: {}]
  %s5 = inlined_call_operand.vmem [shape: f32[2,8,128], index: 5, kind: input, shape index: {}]
  %s6 = inlined_call_operand.vmem [shape: f32[2,8,128], index: 6, kind: input, shape index: {}]
  %s7 = inlined_call_operand.vmem [shape: f32[19,2,128], index: 7, kind: output, shape index: {}]
  %s8 = sld [smem:[#allocation0]]
  $region42: #{gt_bce_dice_loss.1} parent=0
    _
  %s10 = ssub.s32 1, %s8
  %s11 = scalar_select 0, %s10, %s8
  // Predicated region
  $region2: #{gt_bce_dice_loss.1} parent=0 // pred_check
    _
  $region3: #{gt_bce_dice_loss.1} parent=0 // pred_check_branch
    %13 = sbr.rel (0) target = $region5
  $region4: #{gt_bce_dice_loss.1} parent=0 // pred_region
    %s14 = sadd.s32 0, 0
    %p15 = scmp.lt.s32.totalorder %s14, 0
    %s16 = scalar_select %p15, %s14, 0
    %p17 = scmp.lt.s32.totalorder %s16, 0
    %s18 = scalar_select %p17, %s16, 0
    %s19 = smul.addr %s18, 8
    %s20 = scalar_lea.vmem %s0, %s19
    %s21 = sadd.s32 0, 0
    %p22 = scmp.lt.s32.totalorder %s21, 0
    %s23 = scalar_select %p22, %s21, 0
  $region5: #{gt_bce_dice_loss.1} parent=0 // pred_fallthru
    _
  // Predicated region
  $region6: #{gt_bce_dice_loss.1} parent=0 // pred_check
    _
  $region7: #{gt_bce_dice_loss.1} parent=0 // pred_check_branch
    %25 = sbr.rel (0) target = $region9
  $region8: #{gt_bce_dice_loss.1} parent=0 // pred_region
    %s26 = sadd.s32 0, 0
    %p27 = scmp.lt.s32.totalorder %s26, 0
    %s28 = scalar_select %p27, %s26, 0
    %p29 = scmp.lt.s32.totalorder %s28, 0
    %s30 = scalar_select %p29, %s28, 0
    %s31 = smul.addr %s30, 8
    %s32 = scalar_lea.vmem %s1, %s31
    %s33 = sadd.s32 0, 0
    %p34 = scmp.lt.s32.totalorder %s33, 0
    %s35 = scalar_select %p34, %s33, 0
  $region9: #{gt_bce_dice_loss.1} parent=0 // pred_fallthru
    _
  // Predicated region
  $region10: #{gt_bce_dice_loss.1} parent=0 // pred_check
    _
  $region11: #{gt_bce_dice_loss.1} parent=0 // pred_check_branch
    %37 = sbr.rel (0) target = $region13
  $region12: #{gt_bce_dice_loss.1} parent=0 // pred_region
    %s38 = sadd.s32 0, 0
    %p39 = scmp.lt.s32.totalorder %s38, 0
    %s40 = scalar_select %p39, %s38, 0
    %p41 = scmp.lt.s32.totalorder %s40, 0
    %s42 = scalar_select %p41, %s40, 0
    %s43 = smul.addr %s42, 8
    %s44 = scalar_lea.vmem %s2, %s43
    %s45 = sadd.s32 0, 0
    %p46 = scmp.lt.s32.totalorder %s45, 0
    %s47 = scalar_select %p46, %s45, 0
  $region13: #{gt_bce_dice_loss.1} parent=0 // pred_fallthru
    _
  // Predicated region
  $region14: #{gt_bce_dice_loss.1} parent=0 // pred_check
    _
  $region15: #{gt_bce_dice_loss.1} parent=0 // pred_check_branch
    %49 = sbr.rel (0) target = $region17
  $region16: #{gt_bce_dice_loss.1} parent=0 // pred_region
    %s50 = sadd.s32 0, 0
    %p51 = scmp.lt.s32.totalorder %s50, 0
    %s52 = scalar_select %p51, %s50, 0
    %p53 = scmp.lt.s32.totalorder %s52, 0
    %s54 = scalar_select %p53, %s52, 0
    %s55 = smul.addr %s54, 8
    %s56 = scalar_lea.vmem %s3, %s55
    %s57 = sadd.s32 0, 0
    %p58 = scmp.lt.s32.totalorder %s57, 0
    %s59 = scalar_select %p58, %s57, 0
  $region17: #{gt_bce_dice_loss.1} parent=0 // pred_fallthru
    _
  // Predicated region
  $region18: #{gt_bce_dice_loss.1} parent=0 // pred_check
    _
  $region19: #{gt_bce_dice_loss.1} parent=0 // pred_check_branch
    %61 = sbr.rel (0) target = $region21
  $region20: #{gt_bce_dice_loss.1} parent=0 // pred_region
    %s62 = sadd.s32 0, 0
    %p63 = scmp.lt.s32.totalorder %s62, 0
    %s64 = scalar_select %p63, %s62, 0
    %p65 = scmp.lt.s32.totalorder %s64, 0
    %s66 = scalar_select %p65, %s64, 0
    %s67 = smul.addr %s66, 8
    %s68 = scalar_lea.vmem %s4, %s67
    %s69 = sadd.s32 0, 0
    %p70 = scmp.lt.s32.totalorder %s69, 0
    %s71 = scalar_select %p70, %s69, 0
  $region21: #{gt_bce_dice_loss.1} parent=0 // pred_fallthru
    _
  // Predicated region
  $region22: #{gt_bce_dice_loss.1} parent=0 // pred_check
    _
  $region23: #{gt_bce_dice_loss.1} parent=0 // pred_check_branch
    %73 = sbr.rel (0) target = $region25
  $region24: #{gt_bce_dice_loss.1} parent=0 // pred_region
    %s74 = sadd.s32 0, 0
    %p75 = scmp.lt.s32.totalorder %s74, 0
    %s76 = scalar_select %p75, %s74, 0
    %p77 = scmp.lt.s32.totalorder %s76, 0
    %s78 = scalar_select %p77, %s76, 0
    %s79 = smul.addr %s78, 8
    %s80 = scalar_lea.vmem %s5, %s79
    %s81 = sadd.s32 0, 0
    %p82 = scmp.lt.s32.totalorder %s81, 0
    %s83 = scalar_select %p82, %s81, 0
  $region25: #{gt_bce_dice_loss.1} parent=0 // pred_fallthru
    _
  // Predicated region
  $region26: #{gt_bce_dice_loss.1} parent=0 // pred_check
    _
  $region27: #{gt_bce_dice_loss.1} parent=0 // pred_check_branch
    %85 = sbr.rel (0) target = $region29
  $region28: #{gt_bce_dice_loss.1} parent=0 // pred_region
    %s86 = sadd.s32 0, 0
    %p87 = scmp.lt.s32.totalorder %s86, 0
    %s88 = scalar_select %p87, %s86, 0
    %p89 = scmp.lt.s32.totalorder %s88, 0
    %s90 = scalar_select %p89, %s88, 0
    %s91 = smul.addr %s90, 8
    %s92 = scalar_lea.vmem %s6, %s91
    %s93 = sadd.s32 0, 0
    %p94 = scmp.lt.s32.totalorder %s93, 0
    %s95 = scalar_select %p94, %s93, 0
  $region29: #{gt_bce_dice_loss.1} parent=0 // pred_fallthru
    _
  %s96 = sadd.s32 0, 0
  %p97 = scmp.lt.s32.totalorder %s96, 0
  %s98 = scalar_select %p97, %s96, 0
  %p99 = scmp.lt.s32.totalorder %s98, 0
  %s100 = scalar_select %p99, %s98, 0
  %s101 = smul.addr %s100, 8
  %s102 = scalar_lea.vmem %s0, %s101
  %s103 = sadd.s32 0, 0
  %p104 = scmp.lt.s32.totalorder %s103, 0
  %s105 = scalar_select %p104, %s103, 0
  %p106 = scmp.lt.s32.totalorder %s105, 0
  %s107 = scalar_select %p106, %s105, 0
  %s108 = smul.addr %s107, 8
  %s109 = scalar_lea.vmem %s1, %s108
  %s110 = sadd.s32 0, 0
  %p111 = scmp.lt.s32.totalorder %s110, 0
  %s112 = scalar_select %p111, %s110, 0
  %p113 = scmp.lt.s32.totalorder %s112, 0
  %s114 = scalar_select %p113, %s112, 0
  %s115 = smul.addr %s114, 8
  %s116 = scalar_lea.vmem %s2, %s115
  %s117 = sadd.s32 0, 0
  %p118 = scmp.lt.s32.totalorder %s117, 0
  %s119 = scalar_select %p118, %s117, 0
  %p120 = scmp.lt.s32.totalorder %s119, 0
  %s121 = scalar_select %p120, %s119, 0
  %s122 = smul.addr %s121, 8
  %s123 = scalar_lea.vmem %s3, %s122
  %s124 = sadd.s32 0, 0
  %p125 = scmp.lt.s32.totalorder %s124, 0
  %s126 = scalar_select %p125, %s124, 0
  %p127 = scmp.lt.s32.totalorder %s126, 0
  %s128 = scalar_select %p127, %s126, 0
  %s129 = smul.addr %s128, 8
  %s130 = scalar_lea.vmem %s4, %s129
  %s131 = sadd.s32 0, 0
  %p132 = scmp.lt.s32.totalorder %s131, 0
  %s133 = scalar_select %p132, %s131, 0
  %p134 = scmp.lt.s32.totalorder %s133, 0
  %s135 = scalar_select %p134, %s133, 0
  %s136 = smul.addr %s135, 8
  %s137 = scalar_lea.vmem %s5, %s136
  %s138 = sadd.s32 0, 0
  %p139 = scmp.lt.s32.totalorder %s138, 0
  %s140 = scalar_select %p139, %s138, 0
  %p141 = scmp.lt.s32.totalorder %s140, 0
  %s142 = scalar_select %p141, %s140, 0
  %s143 = smul.addr %s142, 8
  %s144 = scalar_lea.vmem %s6, %s143
  %s145 = sadd.s32 0, 0
  %p146 = scmp.lt.s32.totalorder %s145, 0
  %s147 = scalar_select %p146, %s145, 0
  %p148 = scmp.lt.s32.totalorder %s147, 0
  %s149 = scalar_select %p148, %s147, 0
  %s150 = smul.addr %s149, 8
  %s151 = scalar_lea.vmem %s0, %s150
  %s152 = sadd.s32 0, 0
  %p153 = scmp.lt.s32.totalorder %s152, 0
  %s154 = scalar_select %p153, %s152, 0
  %s155 = sadd.s32 0, 0
  %p156 = scmp.lt.s32.totalorder %s155, 0
  %s157 = scalar_select %p156, %s155, 0
  %p158 = scmp.lt.s32.totalorder %s157, 0
  %s159 = scalar_select %p158, %s157, 0
  %s160 = smul.addr %s159, 8
  %s161 = scalar_lea.vmem %s1, %s160
  %s162 = sadd.s32 0, 0
  %p163 = scmp.lt.s32.totalorder %s162, 0
  %s164 = scalar_select %p163, %s162, 0
  %s165 = sadd.s32 0, 0
  %p166 = scmp.lt.s32.totalorder %s165, 0
  %s167 = scalar_select %p166, %s165, 0
  %p168 = scmp.lt.s32.totalorder %s167, 0
  %s169 = scalar_select %p168, %s167, 0
  %s170 = smul.addr %s169, 8
  %s171 = scalar_lea.vmem %s2, %s170
  %s172 = sadd.s32 0, 0
  %p173 = scmp.lt.s32.totalorder %s172, 0
  %s174 = scalar_select %p173, %s172, 0
  %s175 = sadd.s32 0, 0
  %p176 = scmp.lt.s32.totalorder %s175, 0
  %s177 = scalar_select %p176, %s175, 0
  %p178 = scmp.lt.s32.totalorder %s177, 0
  %s179 = scalar_select %p178, %s177, 0
  %s180 = smul.addr %s179, 8
  %s181 = scalar_lea.vmem %s3, %s180
  %s182 = sadd.s32 0, 0
  %p183 = scmp.lt.s32.totalorder %s182, 0
  %s184 = scalar_select %p183, %s182, 0
  %s185 = sadd.s32 0, 0
  %p186 = scmp.lt.s32.totalorder %s185, 0
  %s187 = scalar_select %p186, %s185, 0
  %p188 = scmp.lt.s32.totalorder %s187, 0
  %s189 = scalar_select %p188, %s187, 0
  %s190 = smul.addr %s189, 8
  %s191 = scalar_lea.vmem %s4, %s190
  %s192 = sadd.s32 0, 0
  %p193 = scmp.lt.s32.totalorder %s192, 0
  %s194 = scalar_select %p193, %s192, 0
  %s195 = sadd.s32 0, 0
  %p196 = scmp.lt.s32.totalorder %s195, 0
  %s197 = scalar_select %p196, %s195, 0
  %p198 = scmp.lt.s32.totalorder %s197, 0
  %s199 = scalar_select %p198, %s197, 0
  %s200 = smul.addr %s199, 8
  %s201 = scalar_lea.vmem %s5, %s200
  %s202 = sadd.s32 0, 0
  %p203 = scmp.lt.s32.totalorder %s202, 0
  %s204 = scalar_select %p203, %s202, 0
  %s205 = sadd.s32 0, 0
  %p206 = scmp.lt.s32.totalorder %s205, 0
  %s207 = scalar_select %p206, %s205, 0
  %p208 = scmp.lt.s32.totalorder %s207, 0
  %s209 = scalar_select %p208, %s207, 0
  %s210 = smul.addr %s209, 8
  %s211 = scalar_lea.vmem %s6, %s210
  %s212 = sadd.s32 0, 0
  %p213 = scmp.lt.s32.totalorder %s212, 0
  %s214 = scalar_select %p213, %s212, 0
  %p215 = scmp.eq.s32.totalorder 0, 0
  // Predicated region
  $region30: #{gt_bce_dice_loss.1} parent=0 // pred_check
    %p216 = pneg %p215
  $region31: #{gt_bce_dice_loss.1} parent=0 // pred_check_branch
    %218 = sbr.rel (%p216) target = $region33
  $region32: #{gt_bce_dice_loss.1} parent=0 // pred_region
    %219 = vst [vmem:[%s7] sm:$0x3] 0.0
    %220 = vst [vmem:[%s7 + $0x2] sm:$0x3] 0.0
    %221 = vst [vmem:[%s7 + $0x4] sm:$0x3] 0.0
    %222 = vst [vmem:[%s7 + $0x6] sm:$0x3] 0.0
    %223 = vst [vmem:[%s7 + $0x8] sm:$0x3] 0.0
    %224 = vst [vmem:[%s7 + $0xa] sm:$0x3] 0.0
    %225 = vst [vmem:[%s7 + $0xc] sm:$0x3] 0.0
    %226 = vst [vmem:[%s7 + $0xe] sm:$0x3] 0.0
    %227 = vst [vmem:[%s7 + $0x10] sm:$0x3] 0.0
    %228 = vst [vmem:[%s7 + $0x12] sm:$0x3] 0.0
    %229 = vst [vmem:[%s7 + $0x14] sm:$0x3] 0.0
    %230 = vst [vmem:[%s7 + $0x16] sm:$0x3] 0.0
    %231 = vst [vmem:[%s7 + $0x18] sm:$0x3] 0.0
    %232 = vst [vmem:[%s7 + $0x1a] sm:$0x3] 0.0
    %233 = vst [vmem:[%s7 + $0x1c] sm:$0x3] 0.0
    %234 = vst [vmem:[%s7 + $0x1e] sm:$0x3] 0.0
    %235 = vst [vmem:[%s7 + $0x20] sm:$0x3] 0.0
    %236 = vst [vmem:[%s7 + $0x22] sm:$0x3] 0.0
    %237 = vst [vmem:[%s7 + $0x24] sm:$0x3] 0.0
  $region33: #{gt_bce_dice_loss.1} parent=0 // pred_fallthru
    _
  %v238 = vld [vmem:[%s151] sm:$0xff]
  %v239 = vld [vmem:[%s151 + $0x8] sm:$0xff]
  %v240 = vld [vmem:[%s161] sm:$0xff]
  %v241 = vld [vmem:[%s161 + $0x8] sm:$0xff]
  %v242 = vand.u32 2147483647, %v240
  %v243 = vand.u32 2147483647, %v241
  %v244 = vsub.f32 0.0, %v242
  %v245 = vsub.f32 0.0, %v243
  %v246 = vmul.f32 %v244, 1.442695
  %v247 = vpow.pop %v246
  %v248 = vmul.f32 %v245, 1.442695
  %v249 = vpow.pop %v248
  %v250 = vadd.f32 %v247, 1.0
  %v251 = vadd.f32 %v249, 1.0
  %v252 = vlog2.pop %v250
  %v253 = vmul.f32 %v252, 0.6931472
  %v254 = vlog2.pop %v251
  %v255 = vmul.f32 %v254, 0.6931472
  %v256 = vmax.f32 %v240, 0.0
  %v257 = vmax.f32 %v241, 0.0
  %v258 = vmul.f32 %v240, %v238
  %v259 = vmul.f32 %v241, %v239
  %v260 = vsub.f32 %v256, %v258
  %v261 = vsub.f32 %v257, %v259
  %v262 = vadd.f32 %v260, %v253
  %v263 = vadd.f32 %v261, %v255
  %v264 = vrcp.pop %v250
  %v265 = vrcp.pop %v251
  %v266 = vmul.f32 %v250, %v264
  %v267 = vmul.f32 %v251, %v265
  %v268 = vsub.f32 2.0, %v266
  %v269 = vsub.f32 2.0, %v267
  %v270 = vmul.f32 %v264, %v268
  %v271 = vmul.f32 %v265, %v269
  %vm272 = vcmp.ge.f32.partialorder %v240, 0.0
  %vm273 = vcmp.ge.f32.partialorder %v241, 0.0
  %v274 = vmul.f32 %v247, %v270
  %v275 = vmul.f32 %v249, %v271
  %v276 = vsel %vm272, %v270, %v274
  %v277 = vsel %vm273, %v271, %v275
  %v278 = vrot.slane %v262, 4
  %v279 = vadd.f32 %v262, %v278
  %v280 = vrot.slane %v279, 2
  %v281 = vadd.f32 %v279, %v280
  %v282 = vrot.slane %v281, 1
  %v283 = vadd.f32 %v281, %v282
  %v284 = vrot.slane %v263, 4
  %v285 = vadd.f32 %v263, %v284
  %v286 = vrot.slane %v285, 2
  %v287 = vadd.f32 %v285, %v286
  %v288 = vrot.slane %v287, 1
  %v289 = vadd.f32 %v287, %v288
  %v290 = vmul.f32 %v276, %v238
  %v291 = vmul.f32 %v277, %v239
  %v292 = vrot.slane %v290, 4
  %v293 = vadd.f32 %v290, %v292
  %v294 = vrot.slane %v293, 2
  %v295 = vadd.f32 %v293, %v294
  %v296 = vrot.slane %v295, 1
  %v297 = vadd.f32 %v295, %v296
  %v298 = vrot.slane %v291, 4
  %v299 = vadd.f32 %v291, %v298
  %v300 = vrot.slane %v299, 2
  %v301 = vadd.f32 %v299, %v300
  %v302 = vrot.slane %v301, 1
  %v303 = vadd.f32 %v301, %v302
  %v304 = vrot.slane %v276, 4
  %v305 = vadd.f32 %v276, %v304
  %v306 = vrot.slane %v305, 2
  %v307 = vadd.f32 %v305, %v306
  %v308 = vrot.slane %v307, 1
  %v309 = vadd.f32 %v307, %v308
  %v310 = vrot.slane %v277, 4
  %v311 = vadd.f32 %v277, %v310
  %v312 = vrot.slane %v311, 2
  %v313 = vadd.f32 %v311, %v312
  %v314 = vrot.slane %v313, 1
  %v315 = vadd.f32 %v313, %v314
  %v316 = vld [vmem:[%s171] sm:$0xff]
  %v317 = vld [vmem:[%s171 + $0x8] sm:$0xff]
  %v318 = vand.u32 2147483647, %v316
  %v319 = vand.u32 2147483647, %v317
  %v320 = vsub.f32 0.0, %v318
  %v321 = vsub.f32 0.0, %v319
  %v322 = vmul.f32 %v320, 1.442695
  %v323 = vpow.pop %v322
  %v324 = vmul.f32 %v321, 1.442695
  %v325 = vpow.pop %v324
  %v326 = vadd.f32 %v323, 1.0
  %v327 = vadd.f32 %v325, 1.0
  %v328 = vlog2.pop %v326
  %v329 = vmul.f32 %v328, 0.6931472
  %v330 = vlog2.pop %v327
  %v331 = vmul.f32 %v330, 0.6931472
  %v332 = vmax.f32 %v316, 0.0
  %v333 = vmax.f32 %v317, 0.0
  %v334 = vmul.f32 %v316, %v238
  %v335 = vmul.f32 %v317, %v239
  %v336 = vsub.f32 %v332, %v334
  %v337 = vsub.f32 %v333, %v335
  %v338 = vadd.f32 %v336, %v329
  %v339 = vadd.f32 %v337, %v331
  %v340 = vrcp.pop %v326
  %v341 = vrcp.pop %v327
  %v342 = vmul.f32 %v326, %v340
  %v343 = vmul.f32 %v327, %v341
  %v344 = vsub.f32 2.0, %v342
  %v345 = vsub.f32 2.0, %v343
  %v346 = vmul.f32 %v340, %v344
  %v347 = vmul.f32 %v341, %v345
  %vm348 = vcmp.ge.f32.partialorder %v316, 0.0
  %vm349 = vcmp.ge.f32.partialorder %v317, 0.0
  %v350 = vmul.f32 %v323, %v346
  %v351 = vmul.f32 %v325, %v347
  %v352 = vsel %vm348, %v346, %v350
  %v353 = vsel %vm349, %v347, %v351
  %v354 = vrot.slane %v338, 4
  %v355 = vadd.f32 %v338, %v354
  %v356 = vrot.slane %v355, 2
  %v357 = vadd.f32 %v355, %v356
  %v358 = vrot.slane %v357, 1
  %v359 = vadd.f32 %v357, %v358
  %v360 = vrot.slane %v339, 4
  %v361 = vadd.f32 %v339, %v360
  %v362 = vrot.slane %v361, 2
  %v363 = vadd.f32 %v361, %v362
  %v364 = vrot.slane %v363, 1
  %v365 = vadd.f32 %v363, %v364
  %v366 = vmul.f32 %v352, %v238
  %v367 = vmul.f32 %v353, %v239
  %v368 = vrot.slane %v366, 4
  %v369 = vadd.f32 %v366, %v368
  %v370 = vrot.slane %v369, 2
  %v371 = vadd.f32 %v369, %v370
  %v372 = vrot.slane %v371, 1
  %v373 = vadd.f32 %v371, %v372
  %v374 = vrot.slane %v367, 4
  %v375 = vadd.f32 %v367, %v374
  %v376 = vrot.slane %v375, 2
  %v377 = vadd.f32 %v375, %v376
  %v378 = vrot.slane %v377, 1
  %v379 = vadd.f32 %v377, %v378
  %v380 = vrot.slane %v352, 4
  %v381 = vadd.f32 %v352, %v380
  %v382 = vrot.slane %v381, 2
  %v383 = vadd.f32 %v381, %v382
  %v384 = vrot.slane %v383, 1
  %v385 = vadd.f32 %v383, %v384
  %v386 = vrot.slane %v353, 4
  %v387 = vadd.f32 %v353, %v386
  %v388 = vrot.slane %v387, 2
  %v389 = vadd.f32 %v387, %v388
  %v390 = vrot.slane %v389, 1
  %v391 = vadd.f32 %v389, %v390
  %v392 = vld [vmem:[%s181] sm:$0xff]
  %v393 = vld [vmem:[%s181 + $0x8] sm:$0xff]
  %v394 = vand.u32 2147483647, %v392
  %v395 = vand.u32 2147483647, %v393
  %v396 = vsub.f32 0.0, %v394
  %v397 = vsub.f32 0.0, %v395
  %v398 = vmul.f32 %v396, 1.442695
  %v399 = vpow.pop %v398
  %v400 = vmul.f32 %v397, 1.442695
  %v401 = vpow.pop %v400
  %v402 = vadd.f32 %v399, 1.0
  %v403 = vadd.f32 %v401, 1.0
  %v404 = vlog2.pop %v402
  %v405 = vmul.f32 %v404, 0.6931472
  %v406 = vlog2.pop %v403
  %v407 = vmul.f32 %v406, 0.6931472
  %v408 = vmax.f32 %v392, 0.0
  %v409 = vmax.f32 %v393, 0.0
  %v410 = vmul.f32 %v392, %v238
  %v411 = vmul.f32 %v393, %v239
  %v412 = vsub.f32 %v408, %v410
  %v413 = vsub.f32 %v409, %v411
  %v414 = vadd.f32 %v412, %v405
  %v415 = vadd.f32 %v413, %v407
  %v416 = vrcp.pop %v402
  %v417 = vrcp.pop %v403
  %v418 = vmul.f32 %v402, %v416
  %v419 = vmul.f32 %v403, %v417
  %v420 = vsub.f32 2.0, %v418
  %v421 = vsub.f32 2.0, %v419
  %v422 = vmul.f32 %v416, %v420
  %v423 = vmul.f32 %v417, %v421
  %vm424 = vcmp.ge.f32.partialorder %v392, 0.0
  %vm425 = vcmp.ge.f32.partialorder %v393, 0.0
  %v426 = vmul.f32 %v399, %v422
  %v427 = vmul.f32 %v401, %v423
  %v428 = vsel %vm424, %v422, %v426
  %v429 = vsel %vm425, %v423, %v427
  %v430 = vrot.slane %v414, 4
  %v431 = vadd.f32 %v414, %v430
  %v432 = vrot.slane %v431, 2
  %v433 = vadd.f32 %v431, %v432
  %v434 = vrot.slane %v433, 1
  %v435 = vadd.f32 %v433, %v434
  %v436 = vrot.slane %v415, 4
  %v437 = vadd.f32 %v415, %v436
  %v438 = vrot.slane %v437, 2
  %v439 = vadd.f32 %v437, %v438
  %v440 = vrot.slane %v439, 1
  %v441 = vadd.f32 %v439, %v440
  %v442 = vmul.f32 %v428, %v238
  %v443 = vmul.f32 %v429, %v239
  %v444 = vrot.slane %v442, 4
  %v445 = vadd.f32 %v442, %v444
  %v446 = vrot.slane %v445, 2
  %v447 = vadd.f32 %v445, %v446
  %v448 = vrot.slane %v447, 1
  %v449 = vadd.f32 %v447, %v448
  %v450 = vrot.slane %v443, 4
  %v451 = vadd.f32 %v443, %v450
  %v452 = vrot.slane %v451, 2
  %v453 = vadd.f32 %v451, %v452
  %v454 = vrot.slane %v453, 1
  %v455 = vadd.f32 %v453, %v454
  %v456 = vrot.slane %v428, 4
  %v457 = vadd.f32 %v428, %v456
  %v458 = vrot.slane %v457, 2
  %v459 = vadd.f32 %v457, %v458
  %v460 = vrot.slane %v459, 1
  %v461 = vadd.f32 %v459, %v460
  %v462 = vrot.slane %v429, 4
  %v463 = vadd.f32 %v429, %v462
  %v464 = vrot.slane %v463, 2
  %v465 = vadd.f32 %v463, %v464
  %v466 = vrot.slane %v465, 1
  %v467 = vadd.f32 %v465, %v466
  %v468 = vld [vmem:[%s191] sm:$0xff]
  %v469 = vld [vmem:[%s191 + $0x8] sm:$0xff]
  %v470 = vand.u32 2147483647, %v468
  %v471 = vand.u32 2147483647, %v469
  %v472 = vsub.f32 0.0, %v470
  %v473 = vsub.f32 0.0, %v471
  %v474 = vmul.f32 %v472, 1.442695
  %v475 = vpow.pop %v474
  %v476 = vmul.f32 %v473, 1.442695
  %v477 = vpow.pop %v476
  %v478 = vadd.f32 %v475, 1.0
  %v479 = vadd.f32 %v477, 1.0
  %v480 = vlog2.pop %v478
  %v481 = vmul.f32 %v480, 0.6931472
  %v482 = vlog2.pop %v479
  %v483 = vmul.f32 %v482, 0.6931472
  %v484 = vmax.f32 %v468, 0.0
  %v485 = vmax.f32 %v469, 0.0
  %v486 = vmul.f32 %v468, %v238
  %v487 = vmul.f32 %v469, %v239
  %v488 = vsub.f32 %v484, %v486
  %v489 = vsub.f32 %v485, %v487
  %v490 = vadd.f32 %v488, %v481
  %v491 = vadd.f32 %v489, %v483
  %v492 = vrcp.pop %v478
  %v493 = vrcp.pop %v479
  %v494 = vmul.f32 %v478, %v492
  %v495 = vmul.f32 %v479, %v493
  %v496 = vsub.f32 2.0, %v494
  %v497 = vsub.f32 2.0, %v495
  %v498 = vmul.f32 %v492, %v496
  %v499 = vmul.f32 %v493, %v497
  %vm500 = vcmp.ge.f32.partialorder %v468, 0.0
  %vm501 = vcmp.ge.f32.partialorder %v469, 0.0
  %v502 = vmul.f32 %v475, %v498
  %v503 = vmul.f32 %v477, %v499
  %v504 = vsel %vm500, %v498, %v502
  %v505 = vsel %vm501, %v499, %v503
  %v506 = vrot.slane %v490, 4
  %v507 = vadd.f32 %v490, %v506
  %v508 = vrot.slane %v507, 2
  %v509 = vadd.f32 %v507, %v508
  %v510 = vrot.slane %v509, 1
  %v511 = vadd.f32 %v509, %v510
  %v512 = vrot.slane %v491, 4
  %v513 = vadd.f32 %v491, %v512
  %v514 = vrot.slane %v513, 2
  %v515 = vadd.f32 %v513, %v514
  %v516 = vrot.slane %v515, 1
  %v517 = vadd.f32 %v515, %v516
  %v518 = vmul.f32 %v504, %v238
  %v519 = vmul.f32 %v505, %v239
  %v520 = vrot.slane %v518, 4
  %v521 = vadd.f32 %v518, %v520
  %v522 = vrot.slane %v521, 2
  %v523 = vadd.f32 %v521, %v522
  %v524 = vrot.slane %v523, 1
  %v525 = vadd.f32 %v523, %v524
  %v526 = vrot.slane %v519, 4
  %v527 = vadd.f32 %v519, %v526
  %v528 = vrot.slane %v527, 2
  %v529 = vadd.f32 %v527, %v528
  %v530 = vrot.slane %v529, 1
  %v531 = vadd.f32 %v529, %v530
  %v532 = vrot.slane %v504, 4
  %v533 = vadd.f32 %v504, %v532
  %v534 = vrot.slane %v533, 2
  %v535 = vadd.f32 %v533, %v534
  %v536 = vrot.slane %v535, 1
  %v537 = vadd.f32 %v535, %v536
  %v538 = vrot.slane %v505, 4
  %v539 = vadd.f32 %v505, %v538
  %v540 = vrot.slane %v539, 2
  %v541 = vadd.f32 %v539, %v540
  %v542 = vrot.slane %v541, 1
  %v543 = vadd.f32 %v541, %v542
  %v544 = vld [vmem:[%s201] sm:$0xff]
  %v545 = vld [vmem:[%s201 + $0x8] sm:$0xff]
  %v546 = vand.u32 2147483647, %v544
  %v547 = vand.u32 2147483647, %v545
  %v548 = vsub.f32 0.0, %v546
  %v549 = vsub.f32 0.0, %v547
  %v550 = vmul.f32 %v548, 1.442695
  %v551 = vpow.pop %v550
  %v552 = vmul.f32 %v549, 1.442695
  %v553 = vpow.pop %v552
  %v554 = vadd.f32 %v551, 1.0
  %v555 = vadd.f32 %v553, 1.0
  %v556 = vlog2.pop %v554
  %v557 = vmul.f32 %v556, 0.6931472
  %v558 = vlog2.pop %v555
  %v559 = vmul.f32 %v558, 0.6931472
  %v560 = vmax.f32 %v544, 0.0
  %v561 = vmax.f32 %v545, 0.0
  %v562 = vmul.f32 %v544, %v238
  %v563 = vmul.f32 %v545, %v239
  %v564 = vsub.f32 %v560, %v562
  %v565 = vsub.f32 %v561, %v563
  %v566 = vadd.f32 %v564, %v557
  %v567 = vadd.f32 %v565, %v559
  %v568 = vrcp.pop %v554
  %v569 = vrcp.pop %v555
  %v570 = vmul.f32 %v554, %v568
  %v571 = vmul.f32 %v555, %v569
  %v572 = vsub.f32 2.0, %v570
  %v573 = vsub.f32 2.0, %v571
  %v574 = vmul.f32 %v568, %v572
  %v575 = vmul.f32 %v569, %v573
  %vm576 = vcmp.ge.f32.partialorder %v544, 0.0
  %vm577 = vcmp.ge.f32.partialorder %v545, 0.0
  %v578 = vmul.f32 %v551, %v574
  %v579 = vmul.f32 %v553, %v575
  %v580 = vsel %vm576, %v574, %v578
  %v581 = vsel %vm577, %v575, %v579
  %v582 = vrot.slane %v566, 4
  %v583 = vadd.f32 %v566, %v582
  %v584 = vrot.slane %v583, 2
  %v585 = vadd.f32 %v583, %v584
  %v586 = vrot.slane %v585, 1
  %v587 = vadd.f32 %v585, %v586
  %v588 = vrot.slane %v567, 4
  %v589 = vadd.f32 %v567, %v588
  %v590 = vrot.slane %v589, 2
  %v591 = vadd.f32 %v589, %v590
  %v592 = vrot.slane %v591, 1
  %v593 = vadd.f32 %v591, %v592
  %v594 = vmul.f32 %v580, %v238
  %v595 = vmul.f32 %v581, %v239
  %v596 = vrot.slane %v594, 4
  %v597 = vadd.f32 %v594, %v596
  %v598 = vrot.slane %v597, 2
  %v599 = vadd.f32 %v597, %v598
  %v600 = vrot.slane %v599, 1
  %v601 = vadd.f32 %v599, %v600
  %v602 = vrot.slane %v595, 4
  %v603 = vadd.f32 %v595, %v602
  %v604 = vrot.slane %v603, 2
  %v605 = vadd.f32 %v603, %v604
  %v606 = vrot.slane %v605, 1
  %v607 = vadd.f32 %v605, %v606
  %v608 = vrot.slane %v580, 4
  %v609 = vadd.f32 %v580, %v608
  %v610 = vrot.slane %v609, 2
  %v611 = vadd.f32 %v609, %v610
  %v612 = vrot.slane %v611, 1
  %v613 = vadd.f32 %v611, %v612
  %v614 = vrot.slane %v581, 4
  %v615 = vadd.f32 %v581, %v614
  %v616 = vrot.slane %v615, 2
  %v617 = vadd.f32 %v615, %v616
  %v618 = vrot.slane %v617, 1
  %v619 = vadd.f32 %v617, %v618
  %v620 = vld [vmem:[%s211] sm:$0xff]
  %v621 = vld [vmem:[%s211 + $0x8] sm:$0xff]
  %v622 = vand.u32 2147483647, %v620
  %v623 = vand.u32 2147483647, %v621
  %v624 = vsub.f32 0.0, %v622
  %v625 = vsub.f32 0.0, %v623
  %v626 = vmul.f32 %v624, 1.442695
  %v627 = vpow.pop %v626
  %v628 = vmul.f32 %v625, 1.442695
  %v629 = vpow.pop %v628
  %v630 = vadd.f32 %v627, 1.0
  %v631 = vadd.f32 %v629, 1.0
  %v632 = vlog2.pop %v630
  %v633 = vmul.f32 %v632, 0.6931472
  %v634 = vlog2.pop %v631
  %v635 = vmul.f32 %v634, 0.6931472
  %v636 = vmax.f32 %v620, 0.0
  %v637 = vmax.f32 %v621, 0.0
  %v638 = vmul.f32 %v620, %v238
  %v639 = vmul.f32 %v621, %v239
  %v640 = vsub.f32 %v636, %v638
  %v641 = vsub.f32 %v637, %v639
  %v642 = vadd.f32 %v640, %v633
  %v643 = vadd.f32 %v641, %v635
  %v644 = vrcp.pop %v630
  %v645 = vrcp.pop %v631
  %v646 = vmul.f32 %v630, %v644
  %v647 = vmul.f32 %v631, %v645
  %v648 = vsub.f32 2.0, %v646
  %v649 = vsub.f32 2.0, %v647
  %v650 = vmul.f32 %v644, %v648
  %v651 = vmul.f32 %v645, %v649
  %vm652 = vcmp.ge.f32.partialorder %v620, 0.0
  %vm653 = vcmp.ge.f32.partialorder %v621, 0.0
  %v654 = vmul.f32 %v627, %v650
  %v655 = vmul.f32 %v629, %v651
  %v656 = vsel %vm652, %v650, %v654
  %v657 = vsel %vm653, %v651, %v655
  %v658 = vrot.slane %v642, 4
  %v659 = vadd.f32 %v642, %v658
  %v660 = vrot.slane %v659, 2
  %v661 = vadd.f32 %v659, %v660
  %v662 = vrot.slane %v661, 1
  %v663 = vadd.f32 %v661, %v662
  %v664 = vrot.slane %v643, 4
  %v665 = vadd.f32 %v643, %v664
  %v666 = vrot.slane %v665, 2
  %v667 = vadd.f32 %v665, %v666
  %v668 = vrot.slane %v667, 1
  %v669 = vadd.f32 %v667, %v668
  %v670 = vmul.f32 %v656, %v238
  %v671 = vmul.f32 %v657, %v239
  %v672 = vrot.slane %v670, 4
  %v673 = vadd.f32 %v670, %v672
  %v674 = vrot.slane %v673, 2
  %v675 = vadd.f32 %v673, %v674
  %v676 = vrot.slane %v675, 1
  %v677 = vadd.f32 %v675, %v676
  %v678 = vrot.slane %v671, 4
  %v679 = vadd.f32 %v671, %v678
  %v680 = vrot.slane %v679, 2
  %v681 = vadd.f32 %v679, %v680
  %v682 = vrot.slane %v681, 1
  %v683 = vadd.f32 %v681, %v682
  %v684 = vrot.slane %v656, 4
  %v685 = vadd.f32 %v656, %v684
  %v686 = vrot.slane %v685, 2
  %v687 = vadd.f32 %v685, %v686
  %v688 = vrot.slane %v687, 1
  %v689 = vadd.f32 %v687, %v688
  %v690 = vrot.slane %v657, 4
  %v691 = vadd.f32 %v657, %v690
  %v692 = vrot.slane %v691, 2
  %v693 = vadd.f32 %v691, %v692
  %v694 = vrot.slane %v693, 1
  %v695 = vadd.f32 %v693, %v694
  %v696 = vrot.slane %v238, 4
  %v697 = vadd.f32 %v238, %v696
  %v698 = vrot.slane %v697, 2
  %v699 = vadd.f32 %v697, %v698
  %v700 = vrot.slane %v699, 1
  %v701 = vadd.f32 %v699, %v700
  %v702 = vrot.slane %v239, 4
  %v703 = vadd.f32 %v239, %v702
  %v704 = vrot.slane %v703, 2
  %v705 = vadd.f32 %v703, %v704
  %v706 = vrot.slane %v705, 1
  %v707 = vadd.f32 %v705, %v706
  %v708 = vld [vmem:[%s7] sm:$0x3]
  %v709 = vld [vmem:[%s7 + $0x2] sm:$0x3]
  %v710 = vld [vmem:[%s7 + $0x4] sm:$0x3]
  %v711 = vld [vmem:[%s7 + $0x6] sm:$0x3]
  %v712 = vld [vmem:[%s7 + $0x8] sm:$0x3]
  %v713 = vld [vmem:[%s7 + $0xa] sm:$0x3]
  %v714 = vld [vmem:[%s7 + $0xc] sm:$0x3]
  %v715 = vld [vmem:[%s7 + $0xe] sm:$0x3]
  %v716 = vld [vmem:[%s7 + $0x10] sm:$0x3]
  %v717 = vld [vmem:[%s7 + $0x12] sm:$0x3]
  %v718 = vld [vmem:[%s7 + $0x14] sm:$0x3]
  %v719 = vld [vmem:[%s7 + $0x16] sm:$0x3]
  %v720 = vld [vmem:[%s7 + $0x18] sm:$0x3]
  %v721 = vld [vmem:[%s7 + $0x1a] sm:$0x3]
  %v722 = vld [vmem:[%s7 + $0x1c] sm:$0x3]
  %v723 = vld [vmem:[%s7 + $0x1e] sm:$0x3]
  %v724 = vld [vmem:[%s7 + $0x20] sm:$0x3]
  %v725 = vld [vmem:[%s7 + $0x22] sm:$0x3]
  %v726 = vld [vmem:[%s7 + $0x24] sm:$0x3]
  %v765 = vrot.slane %v289, 7
  %vm766 = vcmask 1041409
  %v767 = vsel %vm766, %v765, %v283
  %v768 = vrot.slane %v365, 7
  %v769 = vsel %vm766, %v768, %v359
  %v770 = vrot.slane %v441, 7
  %v771 = vsel %vm766, %v770, %v435
  %v772 = vrot.slane %v517, 7
  %v773 = vsel %vm766, %v772, %v511
  %v774 = vrot.slane %v593, 7
  %v775 = vsel %vm766, %v774, %v587
  %v776 = vrot.slane %v669, 7
  %v777 = vsel %vm766, %v776, %v663
  %v778 = vrot.slane %v303, 7
  %v779 = vsel %vm766, %v778, %v297
  %v780 = vrot.slane %v379, 7
  %v781 = vsel %vm766, %v780, %v373
  %v782 = vrot.slane %v455, 7
  %v783 = vsel %vm766, %v782, %v449
  %v784 = vrot.slane %v531, 7
  %v785 = vsel %vm766, %v784, %v525
  %v786 = vrot.slane %v607, 7
  %v787 = vsel %vm766, %v786, %v601
  %v788 = vrot.slane %v683, 7
  %v789 = vsel %vm766, %v788, %v677
  %v790 = vrot.slane %v315, 7
  %v791 = vsel %vm766, %v790, %v309
  %v792 = vrot.slane %v391, 7
  %v793 = vsel %vm766, %v792, %v385
  %v794 = vrot.slane %v467, 7
  %v795 = vsel %vm766, %v794, %v461
  %v796 = vrot.slane %v543, 7
  %v797 = vsel %vm766, %v796, %v537
  %v798 = vrot.slane %v619, 7
  %v799 = vsel %vm766, %v798, %v613
  %v800 = vrot.slane %v695, 7
  %v801 = vsel %vm766, %v800, %v689
  %v802 = vrot.slane %v707, 7
  %v803 = vsel %vm766, %v802, %v701
  %v823 = vadd.f32 %v708, %v767
  %v824 = vadd.f32 %v709, %v769
  %v825 = vadd.f32 %v710, %v771
  %v826 = vadd.f32 %v711, %v773
  %v827 = vadd.f32 %v712, %v775
  %v828 = vadd.f32 %v713, %v777
  %v829 = vadd.f32 %v714, %v779
  %v830 = vadd.f32 %v715, %v781
  %v831 = vadd.f32 %v716, %v783
  %v832 = vadd.f32 %v717, %v785
  %v833 = vadd.f32 %v718, %v787
  %v834 = vadd.f32 %v719, %v789
  %v835 = vadd.f32 %v720, %v791
  %v836 = vadd.f32 %v721, %v793
  %v837 = vadd.f32 %v722, %v795
  %v838 = vadd.f32 %v723, %v797
  %v839 = vadd.f32 %v724, %v799
  %v840 = vadd.f32 %v725, %v801
  %v841 = vadd.f32 %v726, %v803
  %842 = vst [vmem:[%s7] sm:$0x3] %v823
  %843 = vst [vmem:[%s7 + $0x2] sm:$0x3] %v824
  %844 = vst [vmem:[%s7 + $0x4] sm:$0x3] %v825
  %845 = vst [vmem:[%s7 + $0x6] sm:$0x3] %v826
  %846 = vst [vmem:[%s7 + $0x8] sm:$0x3] %v827
  %847 = vst [vmem:[%s7 + $0xa] sm:$0x3] %v828
  %848 = vst [vmem:[%s7 + $0xc] sm:$0x3] %v829
  %849 = vst [vmem:[%s7 + $0xe] sm:$0x3] %v830
  %850 = vst [vmem:[%s7 + $0x10] sm:$0x3] %v831
  %851 = vst [vmem:[%s7 + $0x12] sm:$0x3] %v832
  %852 = vst [vmem:[%s7 + $0x14] sm:$0x3] %v833
  %853 = vst [vmem:[%s7 + $0x16] sm:$0x3] %v834
  %854 = vst [vmem:[%s7 + $0x18] sm:$0x3] %v835
  %855 = vst [vmem:[%s7 + $0x1a] sm:$0x3] %v836
  %856 = vst [vmem:[%s7 + $0x1c] sm:$0x3] %v837
  %857 = vst [vmem:[%s7 + $0x1e] sm:$0x3] %v838
  %858 = vst [vmem:[%s7 + $0x20] sm:$0x3] %v839
  %859 = vst [vmem:[%s7 + $0x22] sm:$0x3] %v840
  %860 = vst [vmem:[%s7 + $0x24] sm:$0x3] %v841
  // Predicated region
  $region34: #{gt_bce_dice_loss.1} parent=0 // pred_check
    _
  $region35: #{gt_bce_dice_loss.1} parent=0 // pred_check_branch
    %862 = sbr.rel (0) target = $region37
  $region36: #{gt_bce_dice_loss.1} parent=0 // pred_region
    _
  $region37: #{gt_bce_dice_loss.1} parent=0 // pred_fallthru
    _
  // Predicated region
  $region38: #{gt_bce_dice_loss.1} parent=0 // pred_check
    _
  $region39: #{gt_bce_dice_loss.1} parent=0 // pred_check_branch
    %864 = sbr.rel (0) target = $region41
  $region40: #{gt_bce_dice_loss.1} parent=0 // pred_region
    _
  $region41: #{gt_bce_dice_loss.1} parent=0 // pred_fallthru
    _

</llo_original>
